<compile_context>
chip_gen: v7x
topology: tpu7x:2x2x1
jax: 0.10.0
libtpu: 0.0.40
codegen_flags: <defaults>
</compile_context>

<pallas_src>
import math
import functools

import jax
import jax.numpy as jnp
from jax.experimental import pallas as pl
from jax.experimental.pallas import tpu as pltpu

LRELU_SLOPE = 0.2
ACT_GAIN = math.sqrt(2.0)
INV_SQRT2 = 1.0 / math.sqrt(2.0)
BLUR_LEN = 1          # use_antialias=False -> Blur kernel is [1]
TM_CAP = 512


def _round_up(x, m):
    return (x + m - 1) // m * m


# --------------------------------------------------------------------------
# Pallas kernel: (x @ w) + bias [-> fused leaky-relu * sqrt(2)] [+ res] * scale
# --------------------------------------------------------------------------
def _mm_kernel(x_ref, w_ref, b_ref, *rest, activate, has_res, post_scale):
    if has_res:
        r_ref, o_ref = rest
    else:
        (o_ref,) = rest
    out = jnp.dot(x_ref[...], w_ref[...], preferred_element_type=jnp.float32)
    out = out + b_ref[...]
    if activate:
        out = jnp.where(out >= 0.0, out, out * LRELU_SLOPE) * ACT_GAIN
    if has_res:
        out = out + r_ref[...].astype(jnp.float32)
    if post_scale != 1.0:
        out = out * post_scale
    o_ref[...] = out.astype(o_ref.dtype)


def matmul_fused(x, w, b, *, activate, residual=None, post_scale=1.0,
                 out_dtype=jnp.float32):
    """act(x @ w + b) [+ residual] * post_scale.   x:(M,K), w:(K,N), b:(1,N)."""
    M, K = x.shape
    Kw, N = w.shape
    assert K == Kw

    # Lane tile: multiple of 128 when N allows it (pairlinear), else full N so
    # nothing gets zero-padded / copied in HBM for the small conv channels.
    if N % 256 == 0:
        tn = 256
    elif N % 128 == 0:
        tn = 128
    else:
        tn = N
    tm = min(_round_up(M, 8), TM_CAP)
    Mp = _round_up(M, tm)

    xp = x.astype(jnp.bfloat16)
    if Mp != M:
        xp = jnp.pad(xp, ((0, Mp - M), (0, 0)))
    wp = w.astype(jnp.bfloat16)          # no-op: weights are pre-prepared bf16
    bp = b.astype(jnp.float32)

    inputs = [xp, wp, bp]
    in_specs = [
        pl.BlockSpec((tm, K), lambda i, j: (i, 0)),   # K = full-extent block
        pl.BlockSpec((K, tn), lambda i, j: (0, j)),
        pl.BlockSpec((1, tn), lambda i, j: (0, j)),
    ]
    has_res = residual is not None
    if has_res:
        rp = residual
        if Mp != M:
            rp = jnp.pad(rp, ((0, Mp - M), (0, 0)))
        inputs.append(rp)
        in_specs.append(pl.BlockSpec((tm, tn), lambda i, j: (i, j)))

    bytes_accessed = (Mp * K * xp.dtype.itemsize + K * N * 2 + N * 4
                      + Mp * N * jnp.dtype(out_dtype).itemsize
                      + (Mp * N * residual.dtype.itemsize if has_res else 0))

    out = pl.pallas_call(
        functools.partial(_mm_kernel, activate=activate, has_res=has_res,
                          post_scale=post_scale),
        out_shape=jax.ShapeDtypeStruct((Mp, N), out_dtype),
        grid_spec=pltpu.PrefetchScalarGridSpec(
            num_scalar_prefetch=0,
            grid=(Mp // tm, N // tn),
            in_specs=in_specs,
            out_specs=pl.BlockSpec((tm, tn), lambda i, j: (i, j)),
        ),
        compiler_params=pltpu.CompilerParams(
            dimension_semantics=("parallel", "parallel")),
        cost_estimate=pl.CostEstimate(flops=2 * Mp * N * K, transcendentals=0,
                                      bytes_accessed=int(bytes_accessed)),
    )(*inputs)
    return out[:M] if Mp != M else out


# --------------------------------------------------------------------------
# Parameter preparation (done ONCE): scale, re-layout to (k*k*C, O), cast bf16
# --------------------------------------------------------------------------
def prep_conv(weight, bias, *, downsample=False, pad=None):
    O, C, k, _ = weight.shape
    scale = 1.0 / math.sqrt(C * k * k)
    # im2col K order is (dy, dx, c): (O,C,kh,kw) -> (kh,kw,C,O) -> (k*k*C, O)
    wmat = jnp.transpose(weight * scale, (2, 3, 1, 0)).reshape(k * k * C, O)
    wmat = wmat.astype(jnp.bfloat16)
    b = bias if bias is not None else jnp.zeros((O,), jnp.float32)
    prep = dict(wmat=wmat, bias=b.reshape(1, O).astype(jnp.float32),
                k=k, downsample=downsample)
    if downsample:
        p = (BLUR_LEN - 2) + (k - 1)
        prep.update(pad0=(p + 1) // 2, pad1=p // 2, padding=0, stride=2)
    else:
        prep.update(pad0=0, pad1=0, padding=(k // 2) if pad is None else pad,
                    stride=1)
    return prep


def prep_linear(weight, bias, lr_mul=1.0):
    out_d, in_d = weight.shape
    scale = (1.0 / math.sqrt(in_d)) * lr_mul
    return dict(wmat=(weight * scale).T.astype(jnp.bfloat16),
                bias=(bias * lr_mul).reshape(1, out_d).astype(jnp.float32))


# --------------------------------------------------------------------------
# StyleGAN2 building blocks (NHWC glue; compute = Pallas fused matmul)
# --------------------------------------------------------------------------
def blur_pad_nhwc(x, pad0, pad1):
    # use_antialias=False -> blur kernel [1]: upfirdn2d reduces to pad/crop.
    pb, pa = max(pad0, 0), max(pad1, 0)
    if pb or pa:
        x = jnp.pad(x, ((0, 0), (pb, pa), (pb, pa), (0, 0)))
    cb, ca = -min(pad0, 0), -min(pad1, 0)
    H, W = x.shape[1], x.shape[2]
    return x[:, cb:H - ca, cb:W - ca, :]


def conv_layer_apply(prep, x, *, activate, residual=None, post_scale=1.0,
                     out_dtype=jnp.bfloat16):
    """ConvLayer (NHWC) = [Blur if downsample] -> EqualConv2d -> [FusedLeakyReLU]."""
    k, stride = prep['k'], prep['stride']
    if prep['downsample']:
        x = blur_pad_nhwc(x, prep['pad0'], prep['pad1'])
    if prep['padding'] > 0:
        p = prep['padding']
        x = jnp.pad(x, ((0, 0), (p, p), (p, p), (0, 0)))
    N, H, W, C = x.shape
    Ho = (H - k) // stride + 1
    Wo = (W - k) // stride + 1
    if k == 1 and stride == 1:
        patches = x
    else:
        cols = [x[:, dy:dy + stride * (Ho - 1) + 1:stride,
                     dx:dx + stride * (Wo - 1) + 1:stride, :]
                for dy in range(k) for dx in range(k)]
        patches = jnp.concatenate(cols, axis=-1)        # (N, Ho, Wo, k*k*C)
    xin = patches.reshape(N * Ho * Wo, k * k * C)       # contiguous view
    res2d = residual.reshape(N * Ho * Wo, -1) if residual is not None else None
    out = matmul_fused(xin, prep['wmat'], prep['bias'], activate=activate,
                       residual=res2d, post_scale=post_scale,
                       out_dtype=out_dtype)
    return out.reshape(N, Ho, Wo, -1)


def resblock_apply(blk, x):
    out = conv_layer_apply(blk['conv1'], x, activate=True)
    out = conv_layer_apply(blk['conv2'], out, activate=True)
    # (conv2(out) + skip(x)) / sqrt(2), fused into the skip conv's epilogue.
    return conv_layer_apply(blk['skip'], x, activate=False,
                            residual=out, post_scale=INV_SQRT2)


def convs_apply(convs, x):
    for kind, prep in convs:
        if kind == 'conv':
            x = conv_layer_apply(prep, x, activate=True)
        else:
            x = resblock_apply(prep, x)
    return x


# --------------------------------------------------------------------------
# Parameter construction (mirrors the torch __init__ shapes, then prepared)
# --------------------------------------------------------------------------
def build_params(key, cfg):
    # TODO(synk): use_antialias=True (blur_kernel=[1,3,3,1] upfirdn2d) path not implemented.
    assert not cfg['use_antialias']
    cm = cfg['netPatchD_scale_capacity']
    max_nc = cfg['netPatchD_max_nc']
    size = cfg['patch_size']
    channels = {4: min(max_nc, int(256 * cm)), 8: min(max_nc, int(128 * cm)),
                16: min(max_nc, int(64 * cm)), 32: int(32 * cm),
                64: int(16 * cm), 128: int(8 * cm), 256: int(4 * cm)}
    log_size = int(math.ceil(math.log(size, 2)))
    in_ch = channels[2 ** log_size]
    keys = iter(jax.random.split(key, 128))

    def conv(in_c, out_c, k, *, bias=True, downsample=False, pad=None):
        w = jax.random.normal(next(keys), (out_c, in_c, k, k), jnp.float32)
        b = jnp.zeros((out_c,), jnp.float32) if bias else None
        return prep_conv(w, b, downsample=downsample, pad=pad)

    convs = [('conv', conv(3, in_ch, 3))]
    for i in range(log_size, 2, -1):
        out_ch = channels[2 ** (i - 1)]
        convs.append(('res', {'conv1': conv(in_ch, in_ch, 3),
                              'conv2': conv(in_ch, out_ch, 3, downsample=True),
                              'skip': conv(in_ch, out_ch, 1, bias=False,
                                           downsample=True)}))
        in_ch = out_ch
    convs.append(('res', {'conv1': conv(in_ch, in_ch, 3),
                          'conv2': conv(in_ch, max_nc * 2, 3),
                          'skip': conv(in_ch, max_nc * 2, 1, bias=False)}))
    convs.append(('conv', conv(max_nc * 2, max_nc, 3, pad=0)))

    def linear(in_d, out_d):
        w = jax.random.normal(next(keys), (out_d, in_d), jnp.float32)
        return prep_linear(w, jnp.zeros((out_d,), jnp.float32))

    pairlinear = [linear(channels[4] * 2 * 2 * 2, 2048),
                  linear(2048, 2048), linear(2048, 1024), linear(1024, 1)]
    return {'convs': convs, 'pairlinear': pairlinear}


# --------------------------------------------------------------------------
# Forward pass (mirrors StyleGAN2PatchDiscriminator.forward)
# --------------------------------------------------------------------------
def sample_patches(img, patch_ids, patch_size, num_crops):
    # TODO(synk): reference uses apply_random_crop (random scales + bilinear
    # grid_sample); deterministic unit-scale crops on a fixed grid here.
    B, C, H, W = img.shape
    n_side = int(math.ceil(math.sqrt(num_crops)))

    def offs(total):
        if n_side == 1:
            return [0]
        step = (total - patch_size) // (n_side - 1)
        return [i * step for i in range(n_side)]

    crops = []
    for y in offs(H):
        for x in offs(W):
            if len(crops) < num_crops:
                crops.append(img[:, :, y:y + patch_size, x:x + patch_size])
    return jnp.stack(crops, axis=1), None          # (B, T, C, ps, ps)


def extract_features(params, patches, aggregate=False):
    if patches.ndim == 5:
        B, T, C, H, W = patches.shape
        x = patches.reshape(B * T, C, H, W)
    else:                       # mirrors reference: T = patches.size(1)
        B, C, H, W = patches.shape
        T = patches.shape[1]
        x = patches
    x = jnp.transpose(x, (0, 2, 3, 1))            # NCHW -> NHWC once
    feats = convs_apply(params['convs'], x)       # (B*T, h, w, Cf)
    feats = jnp.transpose(feats, (0, 3, 1, 2))    # tiny; back to NCHW
    Cf, Hf, Wf = feats.shape[1], feats.shape[2], feats.shape[3]
    feats = feats.reshape(B, T, Cf, Hf, Wf)
    if aggregate:
        feats = jnp.broadcast_to(feats.mean(axis=1, keepdims=True), feats.shape)
    return feats.reshape(B * T, Cf, Hf, Wf)


def pairlinear_apply(params, x):
    l = params['pairlinear']
    x = matmul_fused(x, l[0]['wmat'], l[0]['bias'], activate=True, out_dtype=jnp.bfloat16)
    x = matmul_fused(x, l[1]['wmat'], l[1]['bias'], activate=True, out_dtype=jnp.bfloat16)
    x = matmul_fused(x, l[2]['wmat'], l[2]['bias'], activate=True, out_dtype=jnp.bfloat16)
    x = matmul_fused(x, l[3]['wmat'], l[3]['bias'], activate=False, out_dtype=jnp.float32)
    return x


def discriminate_features(params, f1, f2):
    x = jnp.concatenate([f1.reshape(f1.shape[0], -1),
                         f2.reshape(f2.shape[0], -1)], axis=1)
    return pairlinear_apply(params, x)


def forward(params, cfg, real, fake, fake_only=False):
    assert real is not None
    ps, nc = cfg['patch_size'], cfg['patch_num_crops']
    real_patches, patch_ids = sample_patches(real, None, ps, nc)
    bs = real.shape[0]

    if fake is not None:
        fake_patches, _ = sample_patches(fake, patch_ids, ps, nc)
        # Batch real+fake through ONE conv pass (megacore occupancy, fewer launches).
        all_feat = extract_features(
            params, jnp.concatenate([real_patches, fake_patches], axis=0))
        n_real = real_patches.shape[0] * real_patches.shape[1]
        real_feat, fake_feat = all_feat[:n_real], all_feat[n_real:]
    else:
        real_feat = extract_features(params, real_patches)

    def flat(f):
        return f.reshape(f.shape[0], -1)

    need_real = (fake is None) or (not fake_only)
    pair_in = []
    if need_real:
        # Matches reference literally: torch.roll(real_feat, 1, 1) is applied to
        # the flattened (B*T, C, H, W) feature tensor, i.e. a roll over dim 1.
        pair_in.append(jnp.concatenate(
            [flat(real_feat), flat(jnp.roll(real_feat, 1, axis=1))], axis=1))
    if fake is not None:
        pair_in.append(jnp.concatenate(
            [flat(real_feat), flat(jnp.roll(fake_feat, 1, axis=1))], axis=1))
    # Batch both pairlinear branches through one MLP pass.
    preds = pairlinear_apply(params, jnp.concatenate(pair_in, axis=0))

    rows = real_feat.shape[0]
    idx = 0
    pred_real = pred_fake = None
    if need_real:
        pred_real = preds[idx:idx + rows].reshape(bs, -1)
        idx += rows
    if fake is not None:
        pred_fake = preds[idx:idx + rows].reshape(bs, -1)

    if fake is None:
        return pred_real, real_patches
    elif fake_only:
        return pred_fake
    return pred_real, pred_fake


# --------------------------------------------------------------------------
if __name__ == "__main__":
    cfg = dict(
        netPatchD_scale_capacity=0.25,
        netPatchD_max_nc=16,
        patch_size=16,
        max_num_tiles=8,
        use_antialias=False,          # -> blur_kernel = [1]
        spatial_code_ch=8,
        global_code_ch=32,
        lambda_R1=10.0, lambda_patch_R1=1.0, lambda_L1=1.0,
        lambda_GAN=1.0, lambda_PatchGAN=1.0,
        patch_min_scale=0.125, patch_max_scale=0.25,
        patch_num_crops=4,
        patch_use_aggregation=True,
    )

    key = jax.random.PRNGKey(0)
    pkey, rkey, fkey = jax.random.split(key, 3)
    params = build_params(pkey, cfg)

    real = jax.random.normal(rkey, (2, 3, 32, 32), jnp.float32)
    fake = jax.random.normal(fkey, (2, 3, 32, 32), jnp.float32)

    pred_real, pred_fake = forward(params, cfg, real, fake, fake_only=False)
    jax.block_until_ready(pred_real)
    jax.block_until_ready(pred_fake)

    assert pred_real.shape == (2, cfg['patch_num_crops'])
    assert pred_fake.shape == (2, cfg['patch_num_crops'])
    assert bool(jnp.all(jnp.isfinite(pred_real))) and bool(jnp.all(jnp.isfinite(pred_fake)))
    print("KERNEL_OK")
</pallas_src>

<mosaic_0001>
module attributes {stable_mosaic.version = 11 : i64} {
  func.func @_mm_kernel(%arg0: i32, %arg1: i32, %arg2: memref<512x27xbf16, #tpu.memory_space<vmem>>, %arg3: memref<27x16xbf16, #tpu.memory_space<vmem>>, %arg4: memref<1x16xf32, #tpu.memory_space<vmem>>, %arg5: memref<512x16xbf16, #tpu.memory_space<vmem>>) attributes {dimension_semantics = [#tpu.dimension_semantics<parallel>, #tpu.dimension_semantics<parallel>], iteration_bounds = array<i64: 8, 1>, scalar_prefetch = 0 : i64, scratch_operands = 0 : i64, tpu.core_type = #tpu.core_type<tc>, window_params = [{transform_indices = @transform_0, window_bounds = array<i64: 512, 27>}, {transform_indices = @transform_1, window_bounds = array<i64: 27, 16>}, {transform_indices = @transform_2, window_bounds = array<i64: 1, 16>}, {transform_indices = @transform_3, window_bounds = array<i64: 512, 16>}]} {
    %c0 = arith.constant 0 : index
    %c0_0 = arith.constant 0 : index
    %0 = vector.load %arg2[%c0, %c0_0] : memref<512x27xbf16, #tpu.memory_space<vmem>>, vector<512x27xbf16>
    %c0_1 = arith.constant 0 : index
    %c0_2 = arith.constant 0 : index
    %1 = vector.load %arg3[%c0_1, %c0_2] : memref<27x16xbf16, #tpu.memory_space<vmem>>, vector<27x16xbf16>
    %cst = arith.constant dense<0.000000e+00> : vector<512x16xf32>
    %2 = tpu.matmul %0, %1, %cst {dimension_numbers = #tpu.dot_dimension_numbers<[1], [0], [0], [1], [0, 0, 1, 1], [], []>} : vector<512x27xbf16>, vector<27x16xbf16>, vector<512x16xf32> -> vector<512x16xf32>
    %c0_3 = arith.constant 0 : index
    %c0_4 = arith.constant 0 : index
    %3 = vector.load %arg4[%c0_3, %c0_4] : memref<1x16xf32, #tpu.memory_space<vmem>>, vector<1x16xf32>
    %4 = vector.broadcast %3 : vector<1x16xf32> to vector<512x16xf32>
    %5 = arith.addf %2, %4 : vector<512x16xf32>
    %cst_5 = arith.constant 0.000000e+00 : f32
    %6 = vector.broadcast %cst_5 : f32 to vector<512x16xf32>
    %7 = arith.cmpf oge, %5, %6 : vector<512x16xf32>
    %cst_6 = arith.constant 2.000000e-01 : f32
    %8 = vector.broadcast %cst_6 : f32 to vector<512x16xf32>
    %9 = arith.mulf %5, %8 : vector<512x16xf32>
    %10 = arith.select %7, %5, %9 : vector<512x16xi1>, vector<512x16xf32>
    %cst_7 = arith.constant 1.41421354 : f32
    %11 = vector.broadcast %cst_7 : f32 to vector<512x16xf32>
    %12 = arith.mulf %10, %11 : vector<512x16xf32>
    %13 = arith.truncf %12 : vector<512x16xf32> to vector<512x16xbf16>
    %c0_8 = arith.constant 0 : index
    %c0_9 = arith.constant 0 : index
    %14 = vector.load %arg5[%c0_8, %c0_9] : memref<512x16xbf16, #tpu.memory_space<vmem>>, vector<512x16xbf16>
    tpu.vector_store %arg5[%c0_8, %c0_9], %13 {strides = array<i32>} : memref<512x16xbf16, #tpu.memory_space<vmem>>, vector<512x16xbf16>,
    return
  }
  func.func @transform_0(%arg0: i32, %arg1: i32) -> (i32, i32) {
    %c0_i32 = arith.constant 0 : i32
    %c0_i32_0 = arith.constant 0 : i32
    return %arg0, %c0_i32 : i32, i32
  }
  func.func @transform_1(%arg0: i32, %arg1: i32) -> (i32, i32) {
    %c0_i32 = arith.constant 0 : i32
    %c0_i32_0 = arith.constant 0 : i32
    return %c0_i32, %arg1 : i32, i32
  }
  func.func @transform_2(%arg0: i32, %arg1: i32) -> (i32, i32) {
    %c0_i32 = arith.constant 0 : i32
    %c0_i32_0 = arith.constant 0 : i32
    return %c0_i32, %arg1 : i32, i32
  }
  func.func @transform_3(%arg0: i32, %arg1: i32) -> (i32, i32) {
    %c0_i32 = arith.constant 0 : i32
    return %arg0, %arg1 : i32, i32
  }
}

</mosaic_0001>

<llo_original>
// kernel: tpu_custom_call.1
$region0: #{tpu_custom_call.1}
  #allocation0 [shape = 'u32[]', space=smem, size = 0x4, offset = 0x4, fixed_abs, tag = 'smem constant byte address 0x4 - core index']
  #allocation1 [shape = 'u32[144,128]{1,0:T(1,128)}', space=vmem, size = 0x12000, scoped, tag = 'internal scratch']
  %s0 = inlined_call_operand.vmem [shape: bf16[4096,27], index: 0, kind: input, shape index: {}]
  %s1 = inlined_call_operand.vmem [shape: bf16[27,16], index: 1, kind: input, shape index: {}]
  %s2 = inlined_call_operand.vmem [shape: f32[1,16], index: 2, kind: input, shape index: {}]
  %s3 = inlined_call_operand.vmem [shape: bf16[4096,16], index: 3, kind: output, shape index: {}]
  %s4 = sld [smem:[#allocation0]]
  $region45: #{tpu_custom_call.1} parent=0
    _
  %s6 = ssub.s32 1, %s4
  %s7 = scalar_select 0, %s6, %s4
  loop: start=0, step=1, limit=10
  $region2: #{tpu_custom_call.1} parent=0 // loop_pre_header
    _
  $region3: #{tpu_custom_call.1} parent=0 // loop_header
    %s9 = sphi 0, %s13
    %p10 = scmp.ge.s32.totalorder %s9, 10
    %s16 = sphi 0, %s28
    %s17 = sphi 0, %s24
    %s18 = sphi 0, %s16
    %s19 = sphi 0, %s17
    %s20 = sphi 0, %s18
    %s21 = sphi 0, %s19
    %s31 = sphi 0, %s33
    %s34 = sphi 0, %s31
    %s35 = sphi 0, %s34
    %s51 = sphi 0, %s35
    %s57 = sphi 0, %s59
    %s60 = sphi 0, %s57
    %s61 = sphi 0, %s60
    %s77 = sphi 0, %s61
    %s83 = sphi 0, %s85
    %s86 = sphi 0, %s83
    %s87 = sphi 0, %s86
    %s103 = sphi 0, %s87
    %s111 = sphi 0, %s113
    %s114 = sphi 0, %s111
    %s115 = sphi 0, %s114
    %s131 = sphi 0, %s115
  $region4: #{tpu_custom_call.1} parent=0 // loop_header_branch
    %12 = sbr.rel (%p10) target = $region8
  $region5: #{tpu_custom_call.1} parent=0 // loop_body
    %s14 = ssub.s32 %s9, 1
    %s15 = ssub.s32 %s9, 2
    %s22 = sadd.s32 1, %s17
    %p23 = scmp.ge.s32.totalorder %s22, 1
    %s24 = scalar_select %p23, 0, %s22
    %s25 = sadd.s32 1, %s16
    %s26 = scalar_select %p23, %s25, %s16
    %p27 = scmp.ge.s32.totalorder %s26, 8
    %s28 = scalar_select %p27, 0, %s26
    %s29 = ssub.s32 %s16, %s28
    %p30 = scmp.eq.s32.totalorder %s29, 0
    %s32 = sadd.s32 %s31, 1
    %s33 = scalar_select %p30, %s31, %s32
    %p36 = pneg %p30
    %p37 = scmp.eq.s32.totalorder %s9, 7
    %p38 = por %p36, %p37
    %p39 = scmp.ne.s32.totalorder %s31, %s34
    %p40 = scmp.eq.s32.totalorder %s9, 0
    %p41 = por %p39, %p40
    %p42 = scmp.ne.s32.totalorder %s31, %s34
    %p43 = scmp.eq.s32.totalorder %s14, 7
    %p44 = por %p42, %p43
    %p45 = scmp.ne.s32.totalorder %s34, %s35
    %p46 = scmp.eq.s32.totalorder %s14, 0
    %p47 = por %p45, %p46
    %p48 = scmp.ne.s32.totalorder %s34, %s35
    %p49 = scmp.eq.s32.totalorder %s15, 7
    %p50 = por %p48, %p49
    %p52 = scmp.ne.s32.totalorder %s35, %s51
    %p53 = scmp.eq.s32.totalorder %s15, 0
    %p54 = por %p52, %p53
    %s55 = ssub.s32 %s17, %s24
    %p56 = scmp.eq.s32.totalorder %s55, 0
    %s58 = sadd.s32 %s57, 1
    %s59 = scalar_select %p56, %s57, %s58
    %p62 = pneg %p56
    %p63 = scmp.eq.s32.totalorder %s9, 7
    %p64 = por %p62, %p63
    %p65 = scmp.ne.s32.totalorder %s57, %s60
    %p66 = scmp.eq.s32.totalorder %s9, 0
    %p67 = por %p65, %p66
    %p68 = scmp.ne.s32.totalorder %s57, %s60
    %p69 = scmp.eq.s32.totalorder %s14, 7
    %p70 = por %p68, %p69
    %p71 = scmp.ne.s32.totalorder %s60, %s61
    %p72 = scmp.eq.s32.totalorder %s14, 0
    %p73 = por %p71, %p72
    %p74 = scmp.ne.s32.totalorder %s60, %s61
    %p75 = scmp.eq.s32.totalorder %s15, 7
    %p76 = por %p74, %p75
    %p78 = scmp.ne.s32.totalorder %s61, %s77
    %p79 = scmp.eq.s32.totalorder %s15, 0
    %p80 = por %p78, %p79
    %s81 = ssub.s32 %s17, %s24
    %p82 = scmp.eq.s32.totalorder %s81, 0
    %s84 = sadd.s32 %s83, 1
    %s85 = scalar_select %p82, %s83, %s84
    %p88 = pneg %p82
    %p89 = scmp.eq.s32.totalorder %s9, 7
    %p90 = por %p88, %p89
    %p91 = scmp.ne.s32.totalorder %s83, %s86
    %p92 = scmp.eq.s32.totalorder %s9, 0
    %p93 = por %p91, %p92
    %p94 = scmp.ne.s32.totalorder %s83, %s86
    %p95 = scmp.eq.s32.totalorder %s14, 7
    %p96 = por %p94, %p95
    %p97 = scmp.ne.s32.totalorder %s86, %s87
    %p98 = scmp.eq.s32.totalorder %s14, 0
    %p99 = por %p97, %p98
    %p100 = scmp.ne.s32.totalorder %s86, %s87
    %p101 = scmp.eq.s32.totalorder %s15, 7
    %p102 = por %p100, %p101
    %p104 = scmp.ne.s32.totalorder %s87, %s103
    %p105 = scmp.eq.s32.totalorder %s15, 0
    %p106 = por %p104, %p105
    %s107 = ssub.s32 %s16, %s28
    %s108 = ssub.s32 %s17, %s24
    %s109 = sor.u32 %s107, %s108
    %p110 = scmp.eq.s32.totalorder %s109, 0
    %s112 = sadd.s32 %s111, 1
    %s113 = scalar_select %p110, %s111, %s112
    %p116 = pneg %p110
    %p117 = scmp.eq.s32.totalorder %s9, 7
    %p118 = por %p116, %p117
    %p119 = scmp.ne.s32.totalorder %s111, %s114
    %p120 = scmp.eq.s32.totalorder %s9, 0
    %p121 = por %p119, %p120
    %p122 = scmp.ne.s32.totalorder %s111, %s114
    %p123 = scmp.eq.s32.totalorder %s14, 7
    %p124 = por %p122, %p123
    %p125 = scmp.ne.s32.totalorder %s114, %s115
    %p126 = scmp.eq.s32.totalorder %s14, 0
    %p127 = por %p125, %p126
    %p128 = scmp.ne.s32.totalorder %s114, %s115
    %p129 = scmp.eq.s32.totalorder %s15, 7
    %p130 = por %p128, %p129
    %p132 = scmp.ne.s32.totalorder %s115, %s131
    %p133 = scmp.eq.s32.totalorder %s15, 0
    %p134 = por %p132, %p133
    %p135 = scmp.le.s32.totalorder 1, %s9
    %p136 = scmp.lt.s32.totalorder %s9, 9
    %p137 = pnand %p135, %p136
    %p138 = pneg %p137
    // Predicated region
    $region9: #{tpu_custom_call.1} parent=5 // pred_check
      _
    $region10: #{tpu_custom_call.1} parent=5 // pred_check_branch
      %140 = sbr.rel (%p137) target = $region12
    $region11: #{tpu_custom_call.1} parent=5 // pred_region
      %s141 = ssub.s32 %s9, 1
      // Predicated region
      $region13: #{tpu_custom_call.1} parent=11 // pred_check
        %p142 = pneg %p73
      $region14: #{tpu_custom_call.1} parent=11 // pred_check_branch
        %144 = sbr.rel (%p142) target = $region16
      $region15: #{tpu_custom_call.1} parent=11 // pred_region
        %p145 = scmp.lt.s32.totalorder %s19, 0
        %s146 = scalar_select %p145, %s19, 0
        %s147 = smul.addr %s146, 4
        %s148 = scalar_lea.vmem %s1, %s147
      $region16: #{tpu_custom_call.1} parent=11 // pred_fallthru
        _
      // Predicated region
      $region17: #{tpu_custom_call.1} parent=11 // pred_check
        %p149 = pneg %p99
      $region18: #{tpu_custom_call.1} parent=11 // pred_check_branch
        %151 = sbr.rel (%p149) target = $region20
      $region19: #{tpu_custom_call.1} parent=11 // pred_region
        %p152 = scmp.lt.s32.totalorder %s19, 0
        %s153 = scalar_select %p152, %s19, 0
        %s154 = scalar_lea.vmem %s2, %s153
      $region20: #{tpu_custom_call.1} parent=11 // pred_fallthru
        _
    $region12: #{tpu_custom_call.1} parent=5 // pred_fallthru
      _
    %p155 = scmp.lt.s32.totalorder %s9, 8
    // Predicated region
    $region21: #{tpu_custom_call.1} parent=5 // pred_check
      %p156 = pneg %p155
    $region22: #{tpu_custom_call.1} parent=5 // pred_check_branch
      %158 = sbr.rel (%p156) target = $region24
    $region23: #{tpu_custom_call.1} parent=5 // pred_region
      // Predicated region
      $region25: #{tpu_custom_call.1} parent=23 // pred_check
        %p159 = pneg %p41
      $region26: #{tpu_custom_call.1} parent=23 // pred_check_branch
        %161 = sbr.rel (%p159) target = $region28
      $region27: #{tpu_custom_call.1} parent=23 // pred_region
        %s162 = smul.u32 64, %s16
        %p163 = scmp.lt.s32.totalorder %s162, 511
        %s164 = scalar_select %p163, %s162, 511
        %s165 = smul.addr %s164, 4
        %s166 = scalar_lea.vmem %s0, %s165
        %s167 = smul.u32 64, %s16
      $region28: #{tpu_custom_call.1} parent=23 // pred_fallthru
        _
    $region24: #{tpu_custom_call.1} parent=5 // pred_fallthru
      _
    %p168 = scmp.le.s32.totalorder 1, %s9
    %p169 = scmp.lt.s32.totalorder %s9, 9
    %p170 = pnand %p168, %p169
    %p171 = pneg %p170
    // Predicated region
    $region29: #{tpu_custom_call.1} parent=5 // pred_check
      _
    $region30: #{tpu_custom_call.1} parent=5 // pred_check_branch
      %173 = sbr.rel (%p170) target = $region32
    $region31: #{tpu_custom_call.1} parent=5 // pred_region
      %s174 = ssub.s32 %s9, 1
      %s175 = smul.u32 64, %s18
      %p176 = scmp.lt.s32.totalorder %s175, 511
      %s177 = scalar_select %p176, %s175, 511
      %s178 = smul.addr %s177, 4
      %s179 = scalar_lea.vmem %s0, %s178
      %p180 = pneg %p47
      %p181 = pneg %p44
      %p182 = scmp.lt.s32.totalorder %s19, 0
      %s183 = scalar_select %p182, %s19, 0
      %s184 = smul.addr %s183, 4
      %s185 = scalar_lea.vmem %s1, %s184
      %p186 = pneg %p73
      %p187 = pneg %p70
      %p188 = scmp.lt.s32.totalorder %s19, 0
      %s189 = scalar_select %p188, %s19, 0
      %s190 = scalar_lea.vmem %s2, %s189
      %p191 = pneg %p99
      %p192 = pneg %p96
      %p193 = pneg %p127
      %p194 = pneg %p124
      %s195 = smul.u32 64, %s18
      %p196 = scmp.lt.s32.totalorder %s195, 511
      %s197 = scalar_select %p196, %s195, 511
      %p198 = scmp.lt.s32.totalorder %s19, 0
      %s199 = scalar_select %p198, %s19, 0
      %s200 = sadd.s32 %s199, %s197
      %s201 = smul.addr %s200, 4
      %s202 = scalar_lea.vmem %s3, %s201
      %s203 = smul.u32 64, %s18
      %p204 = scmp.lt.s32.totalorder %s203, 511
      %s205 = scalar_select %p204, %s203, 511
      %s206 = smul.addr %s205, 4
      %s207 = scalar_lea.vmem %s0, %s206
      %s208 = smul.u32 64, %s18
      %p209 = scmp.lt.s32.totalorder %s19, 0
      %s210 = scalar_select %p209, %s19, 0
      %s211 = smul.addr %s210, 4
      %s212 = scalar_lea.vmem %s1, %s211
      %p213 = scmp.lt.s32.totalorder %s19, 0
      %s214 = scalar_select %p213, %s19, 0
      %s215 = scalar_lea.vmem %s2, %s214
      %s216 = smul.u32 64, %s18
      %p217 = scmp.lt.s32.totalorder %s216, 511
      %s218 = scalar_select %p217, %s216, 511
      %p219 = scmp.lt.s32.totalorder %s19, 0
      %s220 = scalar_select %p219, %s19, 0
      %s221 = sadd.s32 %s220, %s218
      %s222 = smul.addr %s221, 4
      %s223 = scalar_lea.vmem %s3, %s222
      %s224 = smul.u32 64, %s18
      %v226 = vld [vmem:[%s207] sm:$0xf]
      %v227 = vld [vmem:[%s207 + $0x4] sm:$0xf]
      %v228 = vld [vmem:[%s207 + $0x8] sm:$0xf]
      %v229 = vld [vmem:[%s207 + $0xc] sm:$0xf]
      %v230 = vld [vmem:[%s207 + $0x10] sm:$0xf]
      %v231 = vld [vmem:[%s207 + $0x14] sm:$0xf]
      %v232 = vld [vmem:[%s207 + $0x18] sm:$0xf]
      %v233 = vld [vmem:[%s207 + $0x1c] sm:$0xf]
      %v234 = vld [vmem:[%s207 + $0x20] sm:$0xf]
      %v235 = vld [vmem:[%s207 + $0x24] sm:$0xf]
      %v236 = vld [vmem:[%s207 + $0x28] sm:$0xf]
      %v237 = vld [vmem:[%s207 + $0x2c] sm:$0xf]
      %v238 = vld [vmem:[%s207 + $0x30] sm:$0xf]
      %v239 = vld [vmem:[%s207 + $0x34] sm:$0xf]
      %v240 = vld [vmem:[%s207 + $0x38] sm:$0xf]
      %v241 = vld [vmem:[%s207 + $0x3c] sm:$0xf]
      %v242 = vld [vmem:[%s207 + $0x40] sm:$0xf]
      %v243 = vld [vmem:[%s207 + $0x44] sm:$0xf]
      %v244 = vld [vmem:[%s207 + $0x48] sm:$0xf]
      %v245 = vld [vmem:[%s207 + $0x4c] sm:$0xf]
      %v246 = vld [vmem:[%s207 + $0x50] sm:$0xf]
      %v247 = vld [vmem:[%s207 + $0x54] sm:$0xf]
      %v248 = vld [vmem:[%s207 + $0x58] sm:$0xf]
      %v249 = vld [vmem:[%s207 + $0x5c] sm:$0xf]
      %v250 = vld [vmem:[%s207 + $0x60] sm:$0xf]
      %v251 = vld [vmem:[%s207 + $0x64] sm:$0xf]
      %v252 = vld [vmem:[%s207 + $0x68] sm:$0xf]
      %v253 = vld [vmem:[%s207 + $0x6c] sm:$0xf]
      %v254 = vld [vmem:[%s207 + $0x70] sm:$0xf]
      %v255 = vld [vmem:[%s207 + $0x74] sm:$0xf]
      %v256 = vld [vmem:[%s207 + $0x78] sm:$0xf]
      %v257 = vld [vmem:[%s207 + $0x7c] sm:$0xf]
      %v258 = vld [vmem:[%s207 + $0x80] sm:$0xf]
      %v259 = vld [vmem:[%s207 + $0x84] sm:$0xf]
      %v260 = vld [vmem:[%s207 + $0x88] sm:$0xf]
      %v261 = vld [vmem:[%s207 + $0x8c] sm:$0xf]
      %v262 = vld [vmem:[%s207 + $0x90] sm:$0xf]
      %v263 = vld [vmem:[%s207 + $0x94] sm:$0xf]
      %v264 = vld [vmem:[%s207 + $0x98] sm:$0xf]
      %v265 = vld [vmem:[%s207 + $0x9c] sm:$0xf]
      %v266 = vld [vmem:[%s207 + $0xa0] sm:$0xf]
      %v267 = vld [vmem:[%s207 + $0xa4] sm:$0xf]
      %v268 = vld [vmem:[%s207 + $0xa8] sm:$0xf]
      %v269 = vld [vmem:[%s207 + $0xac] sm:$0xf]
      %v270 = vld [vmem:[%s207 + $0xb0] sm:$0xf]
      %v271 = vld [vmem:[%s207 + $0xb4] sm:$0xf]
      %v272 = vld [vmem:[%s207 + $0xb8] sm:$0xf]
      %v273 = vld [vmem:[%s207 + $0xbc] sm:$0xf]
      %v274 = vld [vmem:[%s207 + $0xc0] sm:$0xf]
      %v275 = vld [vmem:[%s207 + $0xc4] sm:$0xf]
      %v276 = vld [vmem:[%s207 + $0xc8] sm:$0xf]
      %v277 = vld [vmem:[%s207 + $0xcc] sm:$0xf]
      %v278 = vld [vmem:[%s207 + $0xd0] sm:$0xf]
      %v279 = vld [vmem:[%s207 + $0xd4] sm:$0xf]
      %v280 = vld [vmem:[%s207 + $0xd8] sm:$0xf]
      %v281 = vld [vmem:[%s207 + $0xdc] sm:$0xf]
      %v282 = vld [vmem:[%s207 + $0xe0] sm:$0xf]
      %v283 = vld [vmem:[%s207 + $0xe4] sm:$0xf]
      %v284 = vld [vmem:[%s207 + $0xe8] sm:$0xf]
      %v285 = vld [vmem:[%s207 + $0xec] sm:$0xf]
      %v286 = vld [vmem:[%s207 + $0xf0] sm:$0xf]
      %v287 = vld [vmem:[%s207 + $0xf4] sm:$0xf]
      %v288 = vld [vmem:[%s207 + $0xf8] sm:$0xf]
      %v289 = vld [vmem:[%s207 + $0xfc] sm:$0xf]
      %v290 = vld [vmem:[%s212] sm:$0xf]
      %v291 = vld [vmem:[%s212 + $0x4] sm:$0xf]
      %v292 = vld [vmem:[%s212 + $0x8] sm:$0xf]
      %v293 = vld [vmem:[%s212 + $0xc] sm:$0x3]
      %v294 = vld [vmem:[%s215] sm:$0x1]
      %v296 = vlaneseq
      %v297 = vshrl.u32 %v296, 7
      %v298 = vsub.s32 0, %v297
      %v299 = vrot.slane %v294, %v298
      %v365 = vunpack.c.l.b16 %v226
      %v366 = vunpack.c.l.b16 %v227
      %v367 = vunpack.c.l.b16 %v228
      %v368 = vunpack.c.l.b16 %v229
      %v369 = vunpack.c.l.b16 %v230
      %v370 = vunpack.c.l.b16 %v231
      %v371 = vunpack.c.l.b16 %v232
      %v372 = vunpack.c.l.b16 %v233
      %v373 = vunpack.c.l.b16 %v234
      %v374 = vunpack.c.l.b16 %v235
      %v375 = vunpack.c.l.b16 %v236
      %v376 = vunpack.c.l.b16 %v237
      %v377 = vunpack.c.l.b16 %v238
      %v378 = vunpack.c.l.b16 %v239
      %v379 = vunpack.c.l.b16 %v240
      %v380 = vunpack.c.l.b16 %v241
      %v381 = vunpack.c.l.b16 %v242
      %v382 = vunpack.c.l.b16 %v243
      %v383 = vunpack.c.l.b16 %v244
      %v384 = vunpack.c.l.b16 %v245
      %v385 = vunpack.c.l.b16 %v246
      %v386 = vunpack.c.l.b16 %v247
      %v387 = vunpack.c.l.b16 %v248
      %v388 = vunpack.c.l.b16 %v249
      %v389 = vunpack.c.l.b16 %v250
      %v390 = vunpack.c.l.b16 %v251
      %v391 = vunpack.c.l.b16 %v252
      %v392 = vunpack.c.l.b16 %v253
      %v393 = vunpack.c.l.b16 %v254
      %v394 = vunpack.c.l.b16 %v255
      %v395 = vunpack.c.l.b16 %v256
      %v396 = vunpack.c.l.b16 %v257
      %v397 = vunpack.c.l.b16 %v258
      %v398 = vunpack.c.l.b16 %v259
      %v399 = vunpack.c.l.b16 %v260
      %v400 = vunpack.c.l.b16 %v261
      %v401 = vunpack.c.l.b16 %v262
      %v402 = vunpack.c.l.b16 %v263
      %v403 = vunpack.c.l.b16 %v264
      %v404 = vunpack.c.l.b16 %v265
      %v405 = vunpack.c.l.b16 %v266
      %v406 = vunpack.c.l.b16 %v267
      %v407 = vunpack.c.l.b16 %v268
      %v408 = vunpack.c.l.b16 %v269
      %v409 = vunpack.c.l.b16 %v270
      %v410 = vunpack.c.l.b16 %v271
      %v411 = vunpack.c.l.b16 %v272
      %v412 = vunpack.c.l.b16 %v273
      %v413 = vunpack.c.l.b16 %v274
      %v414 = vunpack.c.l.b16 %v275
      %v415 = vunpack.c.l.b16 %v276
      %v416 = vunpack.c.l.b16 %v277
      %v417 = vunpack.c.l.b16 %v278
      %v418 = vunpack.c.l.b16 %v279
      %v419 = vunpack.c.l.b16 %v280
      %v420 = vunpack.c.l.b16 %v281
      %v421 = vunpack.c.l.b16 %v282
      %v422 = vunpack.c.l.b16 %v283
      %v423 = vunpack.c.l.b16 %v284
      %v424 = vunpack.c.l.b16 %v285
      %v425 = vunpack.c.l.b16 %v286
      %v426 = vunpack.c.l.b16 %v287
      %v427 = vunpack.c.l.b16 %v288
      %v428 = vunpack.c.l.b16 %v289
      %v429 = vpack.c.b16 %v366, %v365
      %v430 = vpack.c.b16 %v368, %v367
      %v431 = vpack.c.b16 %v370, %v369
      %v432 = vpack.c.b16 %v372, %v371
      %v433 = vpack.c.b16 %v374, %v373
      %v434 = vpack.c.b16 %v376, %v375
      %v435 = vpack.c.b16 %v378, %v377
      %v436 = vpack.c.b16 %v380, %v379
      %v437 = vpack.c.b16 %v382, %v381
      %v438 = vpack.c.b16 %v384, %v383
      %v439 = vpack.c.b16 %v386, %v385
      %v440 = vpack.c.b16 %v388, %v387
      %v441 = vpack.c.b16 %v390, %v389
      %v442 = vpack.c.b16 %v392, %v391
      %v443 = vpack.c.b16 %v394, %v393
      %v444 = vpack.c.b16 %v396, %v395
      %v445 = vpack.c.b16 %v398, %v397
      %v446 = vpack.c.b16 %v400, %v399
      %v447 = vpack.c.b16 %v402, %v401
      %v448 = vpack.c.b16 %v404, %v403
      %v449 = vpack.c.b16 %v406, %v405
      %v450 = vpack.c.b16 %v408, %v407
      %v451 = vpack.c.b16 %v410, %v409
      %v452 = vpack.c.b16 %v412, %v411
      %v453 = vpack.c.b16 %v414, %v413
      %v454 = vpack.c.b16 %v416, %v415
      %v455 = vpack.c.b16 %v418, %v417
      %v456 = vpack.c.b16 %v420, %v419
      %v457 = vpack.c.b16 %v422, %v421
      %v458 = vpack.c.b16 %v424, %v423
      %v459 = vpack.c.b16 %v426, %v425
      %v460 = vpack.c.b16 %v428, %v427
      %v465 = vunpack.c.l.b16 %v290
      %v466 = vunpack.c.l.b16 %v291
      %v467 = vunpack.c.l.b16 %v292
      %v468 = vunpack.c.l.b16 %v293
      %v469 = vpack.c.b16 %v466, %v465
      %v470 = vpack.c.b16 %v468, %v467
      %vm472 = vcmask 220160
      %v474 = vsel %vm472, %v429, 0
      %v477 = vsel %vm472, %v430, 0
      %v480 = vsel %vm472, %v431, 0
      %v483 = vsel %vm472, %v432, 0
      %v486 = vsel %vm472, %v433, 0
      %v489 = vsel %vm472, %v434, 0
      %v492 = vsel %vm472, %v435, 0
      %v495 = vsel %vm472, %v436, 0
      %v498 = vsel %vm472, %v437, 0
      %v501 = vsel %vm472, %v438, 0
      %v504 = vsel %vm472, %v439, 0
      %v507 = vsel %vm472, %v440, 0
      %v510 = vsel %vm472, %v441, 0
      %v513 = vsel %vm472, %v442, 0
      %v516 = vsel %vm472, %v443, 0
      %v519 = vsel %vm472, %v444, 0
      %v522 = vsel %vm472, %v445, 0
      %v525 = vsel %vm472, %v446, 0
      %v528 = vsel %vm472, %v447, 0
      %v531 = vsel %vm472, %v448, 0
      %v534 = vsel %vm472, %v449, 0
      %v537 = vsel %vm472, %v450, 0
      %v540 = vsel %vm472, %v451, 0
      %v543 = vsel %vm472, %v452, 0
      %v546 = vsel %vm472, %v453, 0
      %v549 = vsel %vm472, %v454, 0
      %v552 = vsel %vm472, %v455, 0
      %v555 = vsel %vm472, %v456, 0
      %v558 = vsel %vm472, %v457, 0
      %v561 = vsel %vm472, %v458, 0
      %v564 = vsel %vm472, %v459, 0
      %v567 = vsel %vm472, %v460, 0
      %vm569 = vcmask 1044480
      %vm570 = vcmask 1045504
      %v571 = vsel %vm569, 4294967295, 65535
      %v572 = vsel %vm570, %v571, 0
      %v574 = vand.u32 %v470, %v572
      %576 = vmatprep.subr.bf16.mxu0 0
      %577 = vmatpush1.bf16.msra.mxu0 %v469
      %578 = vmatprep.subr.bf16.mxu0 0
      %579 = vmatpush1.bf16.msra.mxu0 %v574
      %580 = vmatprep.subr.bf16.mxu0 0
      %581 = vmatpush1.bf16.msra.mxu0 0
      %582 = vmatprep.subr.bf16.mxu0 0
      %583 = vmatpush1.bf16.msra.mxu0 0
      %584 = vmatprep.subr.bf16.mxu0 0
      %585 = vmatpush1.bf16.msra.mxu0 0
      %586 = vmatprep.subr.bf16.mxu0 0
      %587 = vmatpush1.bf16.msra.mxu0 0
      %588 = vmatprep.subr.bf16.mxu0 0
      %589 = vmatpush1.bf16.msra.mxu0 0
      %590 = vmatprep.subr.bf16.mxu0 0
      %591 = vmatpush1.bf16.msra.mxu0 0
      %592 = vmatprep.subr.bf16.mxu0 0
      %593 = vmatpush1.bf16.msra.mxu0 0
      %594 = vmatprep.subr.bf16.mxu0 0
      %595 = vmatpush1.bf16.msra.mxu0 0
      %596 = vmatprep.subr.bf16.mxu0 0
      %597 = vmatpush1.bf16.msra.mxu0 0
      %598 = vmatprep.subr.bf16.mxu0 0
      %599 = vmatpush1.bf16.msra.mxu0 0
      %600 = vmatprep.subr.bf16.mxu0 0
      %601 = vmatpush1.bf16.msra.mxu0 0
      %602 = vmatprep.subr.bf16.mxu0 0
      %603 = vmatpush1.bf16.msra.mxu0 0
      %604 = vmatprep.subr.bf16.mxu0 0
      %605 = vmatpush1.bf16.msra.mxu0 0
      %606 = vmatprep.subr.bf16.mxu0 0
      %607 = vmatpush1.bf16.msra.mxu0 0
      %608 = vmatprep.mubr.bf16.mxu0 0
      %609 = vmatmul.mubr.bf16.gmra.mrb[0].mxu0 %v474
      %v610 = vpop.f32.mrb[0].mxu0
      %v611 = vadd.f32 %v299, %v610
      %v612 = vpop.f32.mrb[0].mxu0
      %v613 = vpop.f32.mrb[0].mxu0
      %v614 = vadd.f32 %v299, %v613
      %v615 = vpop.f32.mrb[0].mxu0
      %616 = vmatprep.mubr.bf16.mxu0 0
      %617 = vmatmul.mubr.bf16.gmra.mrb[0].mxu0 %v477
      %v618 = vpop.f32.mrb[0].mxu0
      %v619 = vadd.f32 %v299, %v618
      %v620 = vpop.f32.mrb[0].mxu0
      %v621 = vpop.f32.mrb[0].mxu0
      %v622 = vadd.f32 %v299, %v621
      %v623 = vpop.f32.mrb[0].mxu0
      %624 = vmatprep.mubr.bf16.mxu0 0
      %625 = vmatmul.mubr.bf16.gmra.mrb[0].mxu0 %v480
      %v626 = vpop.f32.mrb[0].mxu0
      %v627 = vadd.f32 %v299, %v626
      %v628 = vpop.f32.mrb[0].mxu0
      %v629 = vpop.f32.mrb[0].mxu0
      %v630 = vadd.f32 %v299, %v629
      %v631 = vpop.f32.mrb[0].mxu0
      %632 = vmatprep.mubr.bf16.mxu0 0
      %633 = vmatmul.mubr.bf16.gmra.mrb[0].mxu0 %v483
      %v634 = vpop.f32.mrb[0].mxu0
      %v635 = vadd.f32 %v299, %v634
      %v636 = vpop.f32.mrb[0].mxu0
      %v637 = vpop.f32.mrb[0].mxu0
      %v638 = vadd.f32 %v299, %v637
      %v639 = vpop.f32.mrb[0].mxu0
      %640 = vmatprep.mubr.bf16.mxu0 0
      %641 = vmatmul.mubr.bf16.gmra.mrb[0].mxu0 %v486
      %v642 = vpop.f32.mrb[0].mxu0
      %v643 = vadd.f32 %v299, %v642
      %v644 = vpop.f32.mrb[0].mxu0
      %v645 = vpop.f32.mrb[0].mxu0
      %v646 = vadd.f32 %v299, %v645
      %v647 = vpop.f32.mrb[0].mxu0
      %648 = vmatprep.mubr.bf16.mxu0 0
      %649 = vmatmul.mubr.bf16.gmra.mrb[0].mxu0 %v489
      %v650 = vpop.f32.mrb[0].mxu0
      %v651 = vadd.f32 %v299, %v650
      %v652 = vpop.f32.mrb[0].mxu0
      %v653 = vpop.f32.mrb[0].mxu0
      %v654 = vadd.f32 %v299, %v653
      %v655 = vpop.f32.mrb[0].mxu0
      %656 = vmatprep.mubr.bf16.mxu0 0
      %657 = vmatmul.mubr.bf16.gmra.mrb[0].mxu0 %v492
      %v658 = vpop.f32.mrb[0].mxu0
      %v659 = vadd.f32 %v299, %v658
      %v660 = vpop.f32.mrb[0].mxu0
      %v661 = vpop.f32.mrb[0].mxu0
      %v662 = vadd.f32 %v299, %v661
      %v663 = vpop.f32.mrb[0].mxu0
      %664 = vmatprep.mubr.bf16.mxu0 0
      %665 = vmatmul.mubr.bf16.gmra.mrb[0].mxu0 %v495
      %v666 = vpop.f32.mrb[0].mxu0
      %v667 = vadd.f32 %v299, %v666
      %v668 = vpop.f32.mrb[0].mxu0
      %v669 = vpop.f32.mrb[0].mxu0
      %v670 = vadd.f32 %v299, %v669
      %v671 = vpop.f32.mrb[0].mxu0
      %672 = vmatprep.mubr.bf16.mxu0 0
      %673 = vmatmul.mubr.bf16.gmra.mrb[0].mxu0 %v498
      %v674 = vpop.f32.mrb[0].mxu0
      %v675 = vadd.f32 %v299, %v674
      %v676 = vpop.f32.mrb[0].mxu0
      %v677 = vpop.f32.mrb[0].mxu0
      %v678 = vadd.f32 %v299, %v677
      %v679 = vpop.f32.mrb[0].mxu0
      %680 = vmatprep.mubr.bf16.mxu0 0
      %681 = vmatmul.mubr.bf16.gmra.mrb[0].mxu0 %v501
      %v682 = vpop.f32.mrb[0].mxu0
      %v683 = vadd.f32 %v299, %v682
      %v684 = vpop.f32.mrb[0].mxu0
      %v685 = vpop.f32.mrb[0].mxu0
      %v686 = vadd.f32 %v299, %v685
      %v687 = vpop.f32.mrb[0].mxu0
      %688 = vmatprep.mubr.bf16.mxu0 0
      %689 = vmatmul.mubr.bf16.gmra.mrb[0].mxu0 %v504
      %v690 = vpop.f32.mrb[0].mxu0
      %v691 = vadd.f32 %v299, %v690
      %v692 = vpop.f32.mrb[0].mxu0
      %v693 = vpop.f32.mrb[0].mxu0
      %v694 = vadd.f32 %v299, %v693
      %v695 = vpop.f32.mrb[0].mxu0
      %696 = vmatprep.mubr.bf16.mxu0 0
      %697 = vmatmul.mubr.bf16.gmra.mrb[0].mxu0 %v507
      %v698 = vpop.f32.mrb[0].mxu0
      %v699 = vadd.f32 %v299, %v698
      %v700 = vpop.f32.mrb[0].mxu0
      %v701 = vpop.f32.mrb[0].mxu0
      %v702 = vadd.f32 %v299, %v701
      %v703 = vpop.f32.mrb[0].mxu0
      %704 = vmatprep.mubr.bf16.mxu0 0
      %705 = vmatmul.mubr.bf16.gmra.mrb[0].mxu0 %v510
      %v706 = vpop.f32.mrb[0].mxu0
      %v707 = vadd.f32 %v299, %v706
      %v708 = vpop.f32.mrb[0].mxu0
      %v709 = vpop.f32.mrb[0].mxu0
      %v710 = vadd.f32 %v299, %v709
      %v711 = vpop.f32.mrb[0].mxu0
      %712 = vmatprep.mubr.bf16.mxu0 0
      %713 = vmatmul.mubr.bf16.gmra.mrb[0].mxu0 %v513
      %v714 = vpop.f32.mrb[0].mxu0
      %v715 = vadd.f32 %v299, %v714
      %v716 = vpop.f32.mrb[0].mxu0
      %v717 = vpop.f32.mrb[0].mxu0
      %v718 = vadd.f32 %v299, %v717
      %v719 = vpop.f32.mrb[0].mxu0
      %720 = vmatprep.mubr.bf16.mxu0 0
      %721 = vmatmul.mubr.bf16.gmra.mrb[0].mxu0 %v516
      %v722 = vpop.f32.mrb[0].mxu0
      %v723 = vadd.f32 %v299, %v722
      %v724 = vpop.f32.mrb[0].mxu0
      %v725 = vpop.f32.mrb[0].mxu0
      %v726 = vadd.f32 %v299, %v725
      %v727 = vpop.f32.mrb[0].mxu0
      %728 = vmatprep.mubr.bf16.mxu0 0
      %729 = vmatmul.mubr.bf16.gmra.mrb[0].mxu0 %v519
      %v730 = vpop.f32.mrb[0].mxu0
      %v731 = vadd.f32 %v299, %v730
      %v732 = vpop.f32.mrb[0].mxu0
      %v733 = vpop.f32.mrb[0].mxu0
      %v734 = vadd.f32 %v299, %v733
      %v735 = vpop.f32.mrb[0].mxu0
      %736 = vmatprep.mubr.bf16.mxu0 0
      %737 = vmatmul.mubr.bf16.gmra.mrb[0].mxu0 %v522
      %v738 = vpop.f32.mrb[0].mxu0
      %v739 = vadd.f32 %v299, %v738
      %v740 = vpop.f32.mrb[0].mxu0
      %v741 = vpop.f32.mrb[0].mxu0
      %v742 = vadd.f32 %v299, %v741
      %v743 = vpop.f32.mrb[0].mxu0
      %744 = vmatprep.mubr.bf16.mxu0 0
      %745 = vmatmul.mubr.bf16.gmra.mrb[0].mxu0 %v525
      %v746 = vpop.f32.mrb[0].mxu0
      %v747 = vadd.f32 %v299, %v746
      %v748 = vpop.f32.mrb[0].mxu0
      %v749 = vpop.f32.mrb[0].mxu0
      %v750 = vadd.f32 %v299, %v749
      %v751 = vpop.f32.mrb[0].mxu0
      %752 = vmatprep.mubr.bf16.mxu0 0
      %753 = vmatmul.mubr.bf16.gmra.mrb[0].mxu0 %v528
      %v754 = vpop.f32.mrb[0].mxu0
      %v755 = vadd.f32 %v299, %v754
      %v756 = vpop.f32.mrb[0].mxu0
      %v757 = vpop.f32.mrb[0].mxu0
      %v758 = vadd.f32 %v299, %v757
      %v759 = vpop.f32.mrb[0].mxu0
      %760 = vmatprep.mubr.bf16.mxu0 0
      %761 = vmatmul.mubr.bf16.gmra.mrb[0].mxu0 %v531
      %v762 = vpop.f32.mrb[0].mxu0
      %v763 = vadd.f32 %v299, %v762
      %v764 = vpop.f32.mrb[0].mxu0
      %v765 = vpop.f32.mrb[0].mxu0
      %v766 = vadd.f32 %v299, %v765
      %v767 = vpop.f32.mrb[0].mxu0
      %768 = vmatprep.mubr.bf16.mxu0 0
      %769 = vmatmul.mubr.bf16.gmra.mrb[0].mxu0 %v534
      %v770 = vpop.f32.mrb[0].mxu0
      %v771 = vadd.f32 %v299, %v770
      %v772 = vpop.f32.mrb[0].mxu0
      %v773 = vpop.f32.mrb[0].mxu0
      %v774 = vadd.f32 %v299, %v773
      %v775 = vpop.f32.mrb[0].mxu0
      %776 = vmatprep.mubr.bf16.mxu0 0
      %777 = vmatmul.mubr.bf16.gmra.mrb[0].mxu0 %v537
      %v778 = vpop.f32.mrb[0].mxu0
      %v779 = vadd.f32 %v299, %v778
      %v780 = vpop.f32.mrb[0].mxu0
      %v781 = vpop.f32.mrb[0].mxu0
      %v782 = vadd.f32 %v299, %v781
      %v783 = vpop.f32.mrb[0].mxu0
      %784 = vmatprep.mubr.bf16.mxu0 0
      %785 = vmatmul.mubr.bf16.gmra.mrb[0].mxu0 %v540
      %v786 = vpop.f32.mrb[0].mxu0
      %v787 = vadd.f32 %v299, %v786
      %v788 = vpop.f32.mrb[0].mxu0
      %v789 = vpop.f32.mrb[0].mxu0
      %v790 = vadd.f32 %v299, %v789
      %v791 = vpop.f32.mrb[0].mxu0
      %792 = vmatprep.mubr.bf16.mxu0 0
      %793 = vmatmul.mubr.bf16.gmra.mrb[0].mxu0 %v543
      %v794 = vpop.f32.mrb[0].mxu0
      %v795 = vadd.f32 %v299, %v794
      %v796 = vpop.f32.mrb[0].mxu0
      %v797 = vpop.f32.mrb[0].mxu0
      %v798 = vadd.f32 %v299, %v797
      %v799 = vpop.f32.mrb[0].mxu0
      %800 = vmatprep.mubr.bf16.mxu0 0
      %801 = vmatmul.mubr.bf16.gmra.mrb[0].mxu0 %v546
      %v802 = vpop.f32.mrb[0].mxu0
      %v803 = vadd.f32 %v299, %v802
      %v804 = vpop.f32.mrb[0].mxu0
      %v805 = vpop.f32.mrb[0].mxu0
      %v806 = vadd.f32 %v299, %v805
      %v807 = vpop.f32.mrb[0].mxu0
      %808 = vmatprep.mubr.bf16.mxu0 0
      %809 = vmatmul.mubr.bf16.gmra.mrb[0].mxu0 %v549
      %v810 = vpop.f32.mrb[0].mxu0
      %v811 = vadd.f32 %v299, %v810
      %v812 = vpop.f32.mrb[0].mxu0
      %v813 = vpop.f32.mrb[0].mxu0
      %v814 = vadd.f32 %v299, %v813
      %v815 = vpop.f32.mrb[0].mxu0
      %816 = vmatprep.mubr.bf16.mxu0 0
      %817 = vmatmul.mubr.bf16.gmra.mrb[0].mxu0 %v552
      %v818 = vpop.f32.mrb[0].mxu0
      %v819 = vadd.f32 %v299, %v818
      %v820 = vpop.f32.mrb[0].mxu0
      %v821 = vpop.f32.mrb[0].mxu0
      %v822 = vadd.f32 %v299, %v821
      %v823 = vpop.f32.mrb[0].mxu0
      %824 = vmatprep.mubr.bf16.mxu0 0
      %825 = vmatmul.mubr.bf16.gmra.mrb[0].mxu0 %v555
      %v826 = vpop.f32.mrb[0].mxu0
      %v827 = vadd.f32 %v299, %v826
      %v828 = vpop.f32.mrb[0].mxu0
      %v829 = vpop.f32.mrb[0].mxu0
      %v830 = vadd.f32 %v299, %v829
      %v831 = vpop.f32.mrb[0].mxu0
      %832 = vmatprep.mubr.bf16.mxu0 0
      %833 = vmatmul.mubr.bf16.gmra.mrb[0].mxu0 %v558
      %v834 = vpop.f32.mrb[0].mxu0
      %v835 = vadd.f32 %v299, %v834
      %v836 = vpop.f32.mrb[0].mxu0
      %v837 = vpop.f32.mrb[0].mxu0
      %v838 = vadd.f32 %v299, %v837
      %v839 = vpop.f32.mrb[0].mxu0
      %840 = vmatprep.mubr.bf16.mxu0 0
      %841 = vmatmul.mubr.bf16.gmra.mrb[0].mxu0 %v561
      %v842 = vpop.f32.mrb[0].mxu0
      %v843 = vadd.f32 %v299, %v842
      %v844 = vpop.f32.mrb[0].mxu0
      %v845 = vpop.f32.mrb[0].mxu0
      %v846 = vadd.f32 %v299, %v845
      %v847 = vpop.f32.mrb[0].mxu0
      %848 = vmatprep.mubr.bf16.mxu0 0
      %849 = vmatmul.mubr.bf16.gmra.mrb[0].mxu0 %v564
      %v850 = vpop.f32.mrb[0].mxu0
      %v851 = vadd.f32 %v299, %v850
      %v852 = vpop.f32.mrb[0].mxu0
      %v853 = vpop.f32.mrb[0].mxu0
      %v854 = vadd.f32 %v299, %v853
      %v855 = vpop.f32.mrb[0].mxu0
      %856 = vmatprep.mubr.bf16.mxu0 0
      %857 = vmatmul.mubr.bf16.gmra.mrb[0].mxu0 %v567
      %v858 = vpop.f32.mrb[0].mxu0
      %v859 = vadd.f32 %v299, %v858
      %v860 = vpop.f32.mrb[0].mxu0
      %v861 = vpop.f32.mrb[0].mxu0
      %v862 = vadd.f32 %v299, %v861
      %v863 = vpop.f32.mrb[0].mxu0
      %864 = vdwg.mxu0
      %vm865 = vcmp.ge.f32.partialorder %v611, 0.0
      %vm866 = vcmp.ge.f32.partialorder %v614, 0.0
      %vm867 = vcmp.ge.f32.partialorder %v619, 0.0
      %vm868 = vcmp.ge.f32.partialorder %v622, 0.0
      %vm869 = vcmp.ge.f32.partialorder %v627, 0.0
      %vm870 = vcmp.ge.f32.partialorder %v630, 0.0
      %vm871 = vcmp.ge.f32.partialorder %v635, 0.0
      %vm872 = vcmp.ge.f32.partialorder %v638, 0.0
      %vm873 = vcmp.ge.f32.partialorder %v643, 0.0
      %vm874 = vcmp.ge.f32.partialorder %v646, 0.0
      %vm875 = vcmp.ge.f32.partialorder %v651, 0.0
      %vm876 = vcmp.ge.f32.partialorder %v654, 0.0
      %vm877 = vcmp.ge.f32.partialorder %v659, 0.0
      %vm878 = vcmp.ge.f32.partialorder %v662, 0.0
      %vm879 = vcmp.ge.f32.partialorder %v667, 0.0
      %vm880 = vcmp.ge.f32.partialorder %v670, 0.0
      %vm881 = vcmp.ge.f32.partialorder %v675, 0.0
      %vm882 = vcmp.ge.f32.partialorder %v678, 0.0
      %vm883 = vcmp.ge.f32.partialorder %v683, 0.0
      %vm884 = vcmp.ge.f32.partialorder %v686, 0.0
      %vm885 = vcmp.ge.f32.partialorder %v691, 0.0
      %vm886 = vcmp.ge.f32.partialorder %v694, 0.0
      %vm887 = vcmp.ge.f32.partialorder %v699, 0.0
      %vm888 = vcmp.ge.f32.partialorder %v702, 0.0
      %vm889 = vcmp.ge.f32.partialorder %v707, 0.0
      %vm890 = vcmp.ge.f32.partialorder %v710, 0.0
      %vm891 = vcmp.ge.f32.partialorder %v715, 0.0
      %vm892 = vcmp.ge.f32.partialorder %v718, 0.0
      %vm893 = vcmp.ge.f32.partialorder %v723, 0.0
      %vm894 = vcmp.ge.f32.partialorder %v726, 0.0
      %vm895 = vcmp.ge.f32.partialorder %v731, 0.0
      %vm896 = vcmp.ge.f32.partialorder %v734, 0.0
      %vm897 = vcmp.ge.f32.partialorder %v739, 0.0
      %vm898 = vcmp.ge.f32.partialorder %v742, 0.0
      %vm899 = vcmp.ge.f32.partialorder %v747, 0.0
      %vm900 = vcmp.ge.f32.partialorder %v750, 0.0
      %vm901 = vcmp.ge.f32.partialorder %v755, 0.0
      %vm902 = vcmp.ge.f32.partialorder %v758, 0.0
      %vm903 = vcmp.ge.f32.partialorder %v763, 0.0
      %vm904 = vcmp.ge.f32.partialorder %v766, 0.0
      %vm905 = vcmp.ge.f32.partialorder %v771, 0.0
      %vm906 = vcmp.ge.f32.partialorder %v774, 0.0
      %vm907 = vcmp.ge.f32.partialorder %v779, 0.0
      %vm908 = vcmp.ge.f32.partialorder %v782, 0.0
      %vm909 = vcmp.ge.f32.partialorder %v787, 0.0
      %vm910 = vcmp.ge.f32.partialorder %v790, 0.0
      %vm911 = vcmp.ge.f32.partialorder %v795, 0.0
      %vm912 = vcmp.ge.f32.partialorder %v798, 0.0
      %vm913 = vcmp.ge.f32.partialorder %v803, 0.0
      %vm914 = vcmp.ge.f32.partialorder %v806, 0.0
      %vm915 = vcmp.ge.f32.partialorder %v811, 0.0
      %vm916 = vcmp.ge.f32.partialorder %v814, 0.0
      %vm917 = vcmp.ge.f32.partialorder %v819, 0.0
      %vm918 = vcmp.ge.f32.partialorder %v822, 0.0
      %vm919 = vcmp.ge.f32.partialorder %v827, 0.0
      %vm920 = vcmp.ge.f32.partialorder %v830, 0.0
      %vm921 = vcmp.ge.f32.partialorder %v835, 0.0
      %vm922 = vcmp.ge.f32.partialorder %v838, 0.0
      %vm923 = vcmp.ge.f32.partialorder %v843, 0.0
      %vm924 = vcmp.ge.f32.partialorder %v846, 0.0
      %vm925 = vcmp.ge.f32.partialorder %v851, 0.0
      %vm926 = vcmp.ge.f32.partialorder %v854, 0.0
      %vm927 = vcmp.ge.f32.partialorder %v859, 0.0
      %vm928 = vcmp.ge.f32.partialorder %v862, 0.0
      %v929 = vmul.f32 %v611, 0.2
      %v930 = vmul.f32 %v614, 0.2
      %v931 = vmul.f32 %v619, 0.2
      %v932 = vmul.f32 %v622, 0.2
      %v933 = vmul.f32 %v627, 0.2
      %v934 = vmul.f32 %v630, 0.2
      %v935 = vmul.f32 %v635, 0.2
      %v936 = vmul.f32 %v638, 0.2
      %v937 = vmul.f32 %v643, 0.2
      %v938 = vmul.f32 %v646, 0.2
      %v939 = vmul.f32 %v651, 0.2
      %v940 = vmul.f32 %v654, 0.2
      %v941 = vmul.f32 %v659, 0.2
      %v942 = vmul.f32 %v662, 0.2
      %v943 = vmul.f32 %v667, 0.2
      %v944 = vmul.f32 %v670, 0.2
      %v945 = vmul.f32 %v675, 0.2
      %v946 = vmul.f32 %v678, 0.2
      %v947 = vmul.f32 %v683, 0.2
      %v948 = vmul.f32 %v686, 0.2
      %v949 = vmul.f32 %v691, 0.2
      %v950 = vmul.f32 %v694, 0.2
      %v951 = vmul.f32 %v699, 0.2
      %v952 = vmul.f32 %v702, 0.2
      %v953 = vmul.f32 %v707, 0.2
      %v954 = vmul.f32 %v710, 0.2
      %v955 = vmul.f32 %v715, 0.2
      %v956 = vmul.f32 %v718, 0.2
      %v957 = vmul.f32 %v723, 0.2
      %v958 = vmul.f32 %v726, 0.2
      %v959 = vmul.f32 %v731, 0.2
      %v960 = vmul.f32 %v734, 0.2
      %v961 = vmul.f32 %v739, 0.2
      %v962 = vmul.f32 %v742, 0.2
      %v963 = vmul.f32 %v747, 0.2
      %v964 = vmul.f32 %v750, 0.2
      %v965 = vmul.f32 %v755, 0.2
      %v966 = vmul.f32 %v758, 0.2
      %v967 = vmul.f32 %v763, 0.2
      %v968 = vmul.f32 %v766, 0.2
      %v969 = vmul.f32 %v771, 0.2
      %v970 = vmul.f32 %v774, 0.2
      %v971 = vmul.f32 %v779, 0.2
      %v972 = vmul.f32 %v782, 0.2
      %v973 = vmul.f32 %v787, 0.2
      %v974 = vmul.f32 %v790, 0.2
      %v975 = vmul.f32 %v795, 0.2
      %v976 = vmul.f32 %v798, 0.2
      %v977 = vmul.f32 %v803, 0.2
      %v978 = vmul.f32 %v806, 0.2
      %v979 = vmul.f32 %v811, 0.2
      %v980 = vmul.f32 %v814, 0.2
      %v981 = vmul.f32 %v819, 0.2
      %v982 = vmul.f32 %v822, 0.2
      %v983 = vmul.f32 %v827, 0.2
      %v984 = vmul.f32 %v830, 0.2
      %v985 = vmul.f32 %v835, 0.2
      %v986 = vmul.f32 %v838, 0.2
      %v987 = vmul.f32 %v843, 0.2
      %v988 = vmul.f32 %v846, 0.2
      %v989 = vmul.f32 %v851, 0.2
      %v990 = vmul.f32 %v854, 0.2
      %v991 = vmul.f32 %v859, 0.2
      %v992 = vmul.f32 %v862, 0.2
      %v993 = vsel %vm865, %v611, %v929
      %v994 = vsel %vm866, %v614, %v930
      %v995 = vsel %vm867, %v619, %v931
      %v996 = vsel %vm868, %v622, %v932
      %v997 = vsel %vm869, %v627, %v933
      %v998 = vsel %vm870, %v630, %v934
      %v999 = vsel %vm871, %v635, %v935
      %v1000 = vsel %vm872, %v638, %v936
      %v1001 = vsel %vm873, %v643, %v937
      %v1002 = vsel %vm874, %v646, %v938
      %v1003 = vsel %vm875, %v651, %v939
      %v1004 = vsel %vm876, %v654, %v940
      %v1005 = vsel %vm877, %v659, %v941
      %v1006 = vsel %vm878, %v662, %v942
      %v1007 = vsel %vm879, %v667, %v943
      %v1008 = vsel %vm880, %v670, %v944
      %v1009 = vsel %vm881, %v675, %v945
      %v1010 = vsel %vm882, %v678, %v946
      %v1011 = vsel %vm883, %v683, %v947
      %v1012 = vsel %vm884, %v686, %v948
      %v1013 = vsel %vm885, %v691, %v949
      %v1014 = vsel %vm886, %v694, %v950
      %v1015 = vsel %vm887, %v699, %v951
      %v1016 = vsel %vm888, %v702, %v952
      %v1017 = vsel %vm889, %v707, %v953
      %v1018 = vsel %vm890, %v710, %v954
      %v1019 = vsel %vm891, %v715, %v955
      %v1020 = vsel %vm892, %v718, %v956
      %v1021 = vsel %vm893, %v723, %v957
      %v1022 = vsel %vm894, %v726, %v958
      %v1023 = vsel %vm895, %v731, %v959
      %v1024 = vsel %vm896, %v734, %v960
      %v1025 = vsel %vm897, %v739, %v961
      %v1026 = vsel %vm898, %v742, %v962
      %v1027 = vsel %vm899, %v747, %v963
      %v1028 = vsel %vm900, %v750, %v964
      %v1029 = vsel %vm901, %v755, %v965
      %v1030 = vsel %vm902, %v758, %v966
      %v1031 = vsel %vm903, %v763, %v967
      %v1032 = vsel %vm904, %v766, %v968
      %v1033 = vsel %vm905, %v771, %v969
      %v1034 = vsel %vm906, %v774, %v970
      %v1035 = vsel %vm907, %v779, %v971
      %v1036 = vsel %vm908, %v782, %v972
      %v1037 = vsel %vm909, %v787, %v973
      %v1038 = vsel %vm910, %v790, %v974
      %v1039 = vsel %vm911, %v795, %v975
      %v1040 = vsel %vm912, %v798, %v976
      %v1041 = vsel %vm913, %v803, %v977
      %v1042 = vsel %vm914, %v806, %v978
      %v1043 = vsel %vm915, %v811, %v979
      %v1044 = vsel %vm916, %v814, %v980
      %v1045 = vsel %vm917, %v819, %v981
      %v1046 = vsel %vm918, %v822, %v982
      %v1047 = vsel %vm919, %v827, %v983
      %v1048 = vsel %vm920, %v830, %v984
      %v1049 = vsel %vm921, %v835, %v985
      %v1050 = vsel %vm922, %v838, %v986
      %v1051 = vsel %vm923, %v843, %v987
      %v1052 = vsel %vm924, %v846, %v988
      %v1053 = vsel %vm925, %v851, %v989
      %v1054 = vsel %vm926, %v854, %v990
      %v1055 = vsel %vm927, %v859, %v991
      %v1056 = vsel %vm928, %v862, %v992
      %v1057 = vmul.f32 %v993, 1.4142135
      %v1058 = vmul.f32 %v994, 1.4142135
      %v1059 = vmul.f32 %v995, 1.4142135
      %v1060 = vmul.f32 %v996, 1.4142135
      %v1061 = vmul.f32 %v997, 1.4142135
      %v1062 = vmul.f32 %v998, 1.4142135
      %v1063 = vmul.f32 %v999, 1.4142135
      %v1064 = vmul.f32 %v1000, 1.4142135
      %v1065 = vmul.f32 %v1001, 1.4142135
      %v1066 = vmul.f32 %v1002, 1.4142135
      %v1067 = vmul.f32 %v1003, 1.4142135
      %v1068 = vmul.f32 %v1004, 1.4142135
      %v1069 = vmul.f32 %v1005, 1.4142135
      %v1070 = vmul.f32 %v1006, 1.4142135
      %v1071 = vmul.f32 %v1007, 1.4142135
      %v1072 = vmul.f32 %v1008, 1.4142135
      %v1073 = vmul.f32 %v1009, 1.4142135
      %v1074 = vmul.f32 %v1010, 1.4142135
      %v1075 = vmul.f32 %v1011, 1.4142135
      %v1076 = vmul.f32 %v1012, 1.4142135
      %v1077 = vmul.f32 %v1013, 1.4142135
      %v1078 = vmul.f32 %v1014, 1.4142135
      %v1079 = vmul.f32 %v1015, 1.4142135
      %v1080 = vmul.f32 %v1016, 1.4142135
      %v1081 = vmul.f32 %v1017, 1.4142135
      %v1082 = vmul.f32 %v1018, 1.4142135
      %v1083 = vmul.f32 %v1019, 1.4142135
      %v1084 = vmul.f32 %v1020, 1.4142135
      %v1085 = vmul.f32 %v1021, 1.4142135
      %v1086 = vmul.f32 %v1022, 1.4142135
      %v1087 = vmul.f32 %v1023, 1.4142135
      %v1088 = vmul.f32 %v1024, 1.4142135
      %v1089 = vmul.f32 %v1025, 1.4142135
      %v1090 = vmul.f32 %v1026, 1.4142135
      %v1091 = vmul.f32 %v1027, 1.4142135
      %v1092 = vmul.f32 %v1028, 1.4142135
      %v1093 = vmul.f32 %v1029, 1.4142135
      %v1094 = vmul.f32 %v1030, 1.4142135
      %v1095 = vmul.f32 %v1031, 1.4142135
      %v1096 = vmul.f32 %v1032, 1.4142135
      %v1097 = vmul.f32 %v1033, 1.4142135
      %v1098 = vmul.f32 %v1034, 1.4142135
      %v1099 = vmul.f32 %v1035, 1.4142135
      %v1100 = vmul.f32 %v1036, 1.4142135
      %v1101 = vmul.f32 %v1037, 1.4142135
      %v1102 = vmul.f32 %v1038, 1.4142135
      %v1103 = vmul.f32 %v1039, 1.4142135
      %v1104 = vmul.f32 %v1040, 1.4142135
      %v1105 = vmul.f32 %v1041, 1.4142135
      %v1106 = vmul.f32 %v1042, 1.4142135
      %v1107 = vmul.f32 %v1043, 1.4142135
      %v1108 = vmul.f32 %v1044, 1.4142135
      %v1109 = vmul.f32 %v1045, 1.4142135
      %v1110 = vmul.f32 %v1046, 1.4142135
      %v1111 = vmul.f32 %v1047, 1.4142135
      %v1112 = vmul.f32 %v1048, 1.4142135
      %v1113 = vmul.f32 %v1049, 1.4142135
      %v1114 = vmul.f32 %v1050, 1.4142135
      %v1115 = vmul.f32 %v1051, 1.4142135
      %v1116 = vmul.f32 %v1052, 1.4142135
      %v1117 = vmul.f32 %v1053, 1.4142135
      %v1118 = vmul.f32 %v1054, 1.4142135
      %v1119 = vmul.f32 %v1055, 1.4142135
      %v1120 = vmul.f32 %v1056, 1.4142135
      %v1121 = vpack.c.bf16 %v1058, %v1057
      %v1122 = vpack.c.bf16 %v1060, %v1059
      %v1123 = vpack.c.bf16 %v1062, %v1061
      %v1124 = vpack.c.bf16 %v1064, %v1063
      %v1125 = vpack.c.bf16 %v1066, %v1065
      %v1126 = vpack.c.bf16 %v1068, %v1067
      %v1127 = vpack.c.bf16 %v1070, %v1069
      %v1128 = vpack.c.bf16 %v1072, %v1071
      %v1129 = vpack.c.bf16 %v1074, %v1073
      %v1130 = vpack.c.bf16 %v1076, %v1075
      %v1131 = vpack.c.bf16 %v1078, %v1077
      %v1132 = vpack.c.bf16 %v1080, %v1079
      %v1133 = vpack.c.bf16 %v1082, %v1081
      %v1134 = vpack.c.bf16 %v1084, %v1083
      %v1135 = vpack.c.bf16 %v1086, %v1085
      %v1136 = vpack.c.bf16 %v1088, %v1087
      %v1137 = vpack.c.bf16 %v1090, %v1089
      %v1138 = vpack.c.bf16 %v1092, %v1091
      %v1139 = vpack.c.bf16 %v1094, %v1093
      %v1140 = vpack.c.bf16 %v1096, %v1095
      %v1141 = vpack.c.bf16 %v1098, %v1097
      %v1142 = vpack.c.bf16 %v1100, %v1099
      %v1143 = vpack.c.bf16 %v1102, %v1101
      %v1144 = vpack.c.bf16 %v1104, %v1103
      %v1145 = vpack.c.bf16 %v1106, %v1105
      %v1146 = vpack.c.bf16 %v1108, %v1107
      %v1147 = vpack.c.bf16 %v1110, %v1109
      %v1148 = vpack.c.bf16 %v1112, %v1111
      %v1149 = vpack.c.bf16 %v1114, %v1113
      %v1150 = vpack.c.bf16 %v1116, %v1115
      %v1151 = vpack.c.bf16 %v1118, %v1117
      %v1152 = vpack.c.bf16 %v1120, %v1119
      %v1185 = vunpack.c.l.b16 %v1121
      %v1186 = vunpack.c.h.b16 %v1121
      %v1187 = vunpack.c.l.b16 %v1122
      %v1188 = vunpack.c.h.b16 %v1122
      %v1189 = vunpack.c.l.b16 %v1123
      %v1190 = vunpack.c.h.b16 %v1123
      %v1191 = vunpack.c.l.b16 %v1124
      %v1192 = vunpack.c.h.b16 %v1124
      %v1193 = vunpack.c.l.b16 %v1125
      %v1194 = vunpack.c.h.b16 %v1125
      %v1195 = vunpack.c.l.b16 %v1126
      %v1196 = vunpack.c.h.b16 %v1126
      %v1197 = vunpack.c.l.b16 %v1127
      %v1198 = vunpack.c.h.b16 %v1127
      %v1199 = vunpack.c.l.b16 %v1128
      %v1200 = vunpack.c.h.b16 %v1128
      %v1201 = vunpack.c.l.b16 %v1129
      %v1202 = vunpack.c.h.b16 %v1129
      %v1203 = vunpack.c.l.b16 %v1130
      %v1204 = vunpack.c.h.b16 %v1130
      %v1205 = vunpack.c.l.b16 %v1131
      %v1206 = vunpack.c.h.b16 %v1131
      %v1207 = vunpack.c.l.b16 %v1132
      %v1208 = vunpack.c.h.b16 %v1132
      %v1209 = vunpack.c.l.b16 %v1133
      %v1210 = vunpack.c.h.b16 %v1133
      %v1211 = vunpack.c.l.b16 %v1134
      %v1212 = vunpack.c.h.b16 %v1134
      %v1213 = vunpack.c.l.b16 %v1135
      %v1214 = vunpack.c.h.b16 %v1135
      %v1215 = vunpack.c.l.b16 %v1136
      %v1216 = vunpack.c.h.b16 %v1136
      %v1217 = vunpack.c.l.b16 %v1137
      %v1218 = vunpack.c.h.b16 %v1137
      %v1219 = vunpack.c.l.b16 %v1138
      %v1220 = vunpack.c.h.b16 %v1138
      %v1221 = vunpack.c.l.b16 %v1139
      %v1222 = vunpack.c.h.b16 %v1139
      %v1223 = vunpack.c.l.b16 %v1140
      %v1224 = vunpack.c.h.b16 %v1140
      %v1225 = vunpack.c.l.b16 %v1141
      %v1226 = vunpack.c.h.b16 %v1141
      %v1227 = vunpack.c.l.b16 %v1142
      %v1228 = vunpack.c.h.b16 %v1142
      %v1229 = vunpack.c.l.b16 %v1143
      %v1230 = vunpack.c.h.b16 %v1143
      %v1231 = vunpack.c.l.b16 %v1144
      %v1232 = vunpack.c.h.b16 %v1144
      %v1233 = vunpack.c.l.b16 %v1145
      %v1234 = vunpack.c.h.b16 %v1145
      %v1235 = vunpack.c.l.b16 %v1146
      %v1236 = vunpack.c.h.b16 %v1146
      %v1237 = vunpack.c.l.b16 %v1147
      %v1238 = vunpack.c.h.b16 %v1147
      %v1239 = vunpack.c.l.b16 %v1148
      %v1240 = vunpack.c.h.b16 %v1148
      %v1241 = vunpack.c.l.b16 %v1149
      %v1242 = vunpack.c.h.b16 %v1149
      %v1243 = vunpack.c.l.b16 %v1150
      %v1244 = vunpack.c.h.b16 %v1150
      %v1245 = vunpack.c.l.b16 %v1151
      %v1246 = vunpack.c.h.b16 %v1151
      %v1247 = vunpack.c.l.b16 %v1152
      %v1248 = vunpack.c.h.b16 %v1152
      %v1249 = vpack.c.b16 %v1185, %v1185
      %v1250 = vpack.c.b16 %v1186, %v1186
      %v1251 = vpack.c.b16 %v1187, %v1187
      %v1252 = vpack.c.b16 %v1188, %v1188
      %v1253 = vpack.c.b16 %v1189, %v1189
      %v1254 = vpack.c.b16 %v1190, %v1190
      %v1255 = vpack.c.b16 %v1191, %v1191
      %v1256 = vpack.c.b16 %v1192, %v1192
      %v1257 = vpack.c.b16 %v1193, %v1193
      %v1258 = vpack.c.b16 %v1194, %v1194
      %v1259 = vpack.c.b16 %v1195, %v1195
      %v1260 = vpack.c.b16 %v1196, %v1196
      %v1261 = vpack.c.b16 %v1197, %v1197
      %v1262 = vpack.c.b16 %v1198, %v1198
      %v1263 = vpack.c.b16 %v1199, %v1199
      %v1264 = vpack.c.b16 %v1200, %v1200
      %v1265 = vpack.c.b16 %v1201, %v1201
      %v1266 = vpack.c.b16 %v1202, %v1202
      %v1267 = vpack.c.b16 %v1203, %v1203
      %v1268 = vpack.c.b16 %v1204, %v1204
      %v1269 = vpack.c.b16 %v1205, %v1205
      %v1270 = vpack.c.b16 %v1206, %v1206
      %v1271 = vpack.c.b16 %v1207, %v1207
      %v1272 = vpack.c.b16 %v1208, %v1208
      %v1273 = vpack.c.b16 %v1209, %v1209
      %v1274 = vpack.c.b16 %v1210, %v1210
      %v1275 = vpack.c.b16 %v1211, %v1211
      %v1276 = vpack.c.b16 %v1212, %v1212
      %v1277 = vpack.c.b16 %v1213, %v1213
      %v1278 = vpack.c.b16 %v1214, %v1214
      %v1279 = vpack.c.b16 %v1215, %v1215
      %v1280 = vpack.c.b16 %v1216, %v1216
      %v1281 = vpack.c.b16 %v1217, %v1217
      %v1282 = vpack.c.b16 %v1218, %v1218
      %v1283 = vpack.c.b16 %v1219, %v1219
      %v1284 = vpack.c.b16 %v1220, %v1220
      %v1285 = vpack.c.b16 %v1221, %v1221
      %v1286 = vpack.c.b16 %v1222, %v1222
      %v1287 = vpack.c.b16 %v1223, %v1223
      %v1288 = vpack.c.b16 %v1224, %v1224
      %v1289 = vpack.c.b16 %v1225, %v1225
      %v1290 = vpack.c.b16 %v1226, %v1226
      %v1291 = vpack.c.b16 %v1227, %v1227
      %v1292 = vpack.c.b16 %v1228, %v1228
      %v1293 = vpack.c.b16 %v1229, %v1229
      %v1294 = vpack.c.b16 %v1230, %v1230
      %v1295 = vpack.c.b16 %v1231, %v1231
      %v1296 = vpack.c.b16 %v1232, %v1232
      %v1297 = vpack.c.b16 %v1233, %v1233
      %v1298 = vpack.c.b16 %v1234, %v1234
      %v1299 = vpack.c.b16 %v1235, %v1235
      %v1300 = vpack.c.b16 %v1236, %v1236
      %v1301 = vpack.c.b16 %v1237, %v1237
      %v1302 = vpack.c.b16 %v1238, %v1238
      %v1303 = vpack.c.b16 %v1239, %v1239
      %v1304 = vpack.c.b16 %v1240, %v1240
      %v1305 = vpack.c.b16 %v1241, %v1241
      %v1306 = vpack.c.b16 %v1242, %v1242
      %v1307 = vpack.c.b16 %v1243, %v1243
      %v1308 = vpack.c.b16 %v1244, %v1244
      %v1309 = vpack.c.b16 %v1245, %v1245
      %v1310 = vpack.c.b16 %v1246, %v1246
      %v1311 = vpack.c.b16 %v1247, %v1247
      %v1312 = vpack.c.b16 %v1248, %v1248
      %vm1377 = vcmask 125952
      %1378 = vst.msk [vmem:[%s223] sm:$0xf] %vm1377, %v1249
      %1379 = vst.msk [vmem:[%s223 + $0x4] sm:$0xf] %vm1377, %v1250
      %1380 = vst.msk [vmem:[%s223 + $0x8] sm:$0xf] %vm1377, %v1251
      %1381 = vst.msk [vmem:[%s223 + $0xc] sm:$0xf] %vm1377, %v1252
      %1382 = vst.msk [vmem:[%s223 + $0x10] sm:$0xf] %vm1377, %v1253
      %1383 = vst.msk [vmem:[%s223 + $0x14] sm:$0xf] %vm1377, %v1254
      %1384 = vst.msk [vmem:[%s223 + $0x18] sm:$0xf] %vm1377, %v1255
      %1385 = vst.msk [vmem:[%s223 + $0x1c] sm:$0xf] %vm1377, %v1256
      %1386 = vst.msk [vmem:[%s223 + $0x20] sm:$0xf] %vm1377, %v1257
      %1387 = vst.msk [vmem:[%s223 + $0x24] sm:$0xf] %vm1377, %v1258
      %1388 = vst.msk [vmem:[%s223 + $0x28] sm:$0xf] %vm1377, %v1259
      %1389 = vst.msk [vmem:[%s223 + $0x2c] sm:$0xf] %vm1377, %v1260
      %1390 = vst.msk [vmem:[%s223 + $0x30] sm:$0xf] %vm1377, %v1261
      %1391 = vst.msk [vmem:[%s223 + $0x34] sm:$0xf] %vm1377, %v1262
      %1392 = vst.msk [vmem:[%s223 + $0x38] sm:$0xf] %vm1377, %v1263
      %1393 = vst.msk [vmem:[%s223 + $0x3c] sm:$0xf] %vm1377, %v1264
      %1394 = vst.msk [vmem:[%s223 + $0x40] sm:$0xf] %vm1377, %v1265
      %1395 = vst.msk [vmem:[%s223 + $0x44] sm:$0xf] %vm1377, %v1266
      %1396 = vst.msk [vmem:[%s223 + $0x48] sm:$0xf] %vm1377, %v1267
      %1397 = vst.msk [vmem:[%s223 + $0x4c] sm:$0xf] %vm1377, %v1268
      %1398 = vst.msk [vmem:[%s223 + $0x50] sm:$0xf] %vm1377, %v1269
      %1399 = vst.msk [vmem:[%s223 + $0x54] sm:$0xf] %vm1377, %v1270
      %1400 = vst.msk [vmem:[%s223 + $0x58] sm:$0xf] %vm1377, %v1271
      %1401 = vst.msk [vmem:[%s223 + $0x5c] sm:$0xf] %vm1377, %v1272
      %1402 = vst.msk [vmem:[%s223 + $0x60] sm:$0xf] %vm1377, %v1273
      %1403 = vst.msk [vmem:[%s223 + $0x64] sm:$0xf] %vm1377, %v1274
      %1404 = vst.msk [vmem:[%s223 + $0x68] sm:$0xf] %vm1377, %v1275
      %1405 = vst.msk [vmem:[%s223 + $0x6c] sm:$0xf] %vm1377, %v1276
      %1406 = vst.msk [vmem:[%s223 + $0x70] sm:$0xf] %vm1377, %v1277
      %1407 = vst.msk [vmem:[%s223 + $0x74] sm:$0xf] %vm1377, %v1278
      %1408 = vst.msk [vmem:[%s223 + $0x78] sm:$0xf] %vm1377, %v1279
      %1409 = vst.msk [vmem:[%s223 + $0x7c] sm:$0xf] %vm1377, %v1280
      %1410 = vst.msk [vmem:[%s223 + $0x80] sm:$0xf] %vm1377, %v1281
      %1411 = vst.msk [vmem:[%s223 + $0x84] sm:$0xf] %vm1377, %v1282
      %1412 = vst.msk [vmem:[%s223 + $0x88] sm:$0xf] %vm1377, %v1283
      %1413 = vst.msk [vmem:[%s223 + $0x8c] sm:$0xf] %vm1377, %v1284
      %1414 = vst.msk [vmem:[%s223 + $0x90] sm:$0xf] %vm1377, %v1285
      %1415 = vst.msk [vmem:[%s223 + $0x94] sm:$0xf] %vm1377, %v1286
      %1416 = vst.msk [vmem:[%s223 + $0x98] sm:$0xf] %vm1377, %v1287
      %1417 = vst.msk [vmem:[%s223 + $0x9c] sm:$0xf] %vm1377, %v1288
      %1418 = vst.msk [vmem:[%s223 + $0xa0] sm:$0xf] %vm1377, %v1289
      %1419 = vst.msk [vmem:[%s223 + $0xa4] sm:$0xf] %vm1377, %v1290
      %1420 = vst.msk [vmem:[%s223 + $0xa8] sm:$0xf] %vm1377, %v1291
      %1421 = vst.msk [vmem:[%s223 + $0xac] sm:$0xf] %vm1377, %v1292
      %1422 = vst.msk [vmem:[%s223 + $0xb0] sm:$0xf] %vm1377, %v1293
      %1423 = vst.msk [vmem:[%s223 + $0xb4] sm:$0xf] %vm1377, %v1294
      %1424 = vst.msk [vmem:[%s223 + $0xb8] sm:$0xf] %vm1377, %v1295
      %1425 = vst.msk [vmem:[%s223 + $0xbc] sm:$0xf] %vm1377, %v1296
      %1426 = vst.msk [vmem:[%s223 + $0xc0] sm:$0xf] %vm1377, %v1297
      %1427 = vst.msk [vmem:[%s223 + $0xc4] sm:$0xf] %vm1377, %v1298
      %1428 = vst.msk [vmem:[%s223 + $0xc8] sm:$0xf] %vm1377, %v1299
      %1429 = vst.msk [vmem:[%s223 + $0xcc] sm:$0xf] %vm1377, %v1300
      %1430 = vst.msk [vmem:[%s223 + $0xd0] sm:$0xf] %vm1377, %v1301
      %1431 = vst.msk [vmem:[%s223 + $0xd4] sm:$0xf] %vm1377, %v1302
      %1432 = vst.msk [vmem:[%s223 + $0xd8] sm:$0xf] %vm1377, %v1303
      %1433 = vst.msk [vmem:[%s223 + $0xdc] sm:$0xf] %vm1377, %v1304
      %1434 = vst.msk [vmem:[%s223 + $0xe0] sm:$0xf] %vm1377, %v1305
      %1435 = vst.msk [vmem:[%s223 + $0xe4] sm:$0xf] %vm1377, %v1306
      %1436 = vst.msk [vmem:[%s223 + $0xe8] sm:$0xf] %vm1377, %v1307
      %1437 = vst.msk [vmem:[%s223 + $0xec] sm:$0xf] %vm1377, %v1308
      %1438 = vst.msk [vmem:[%s223 + $0xf0] sm:$0xf] %vm1377, %v1309
      %1439 = vst.msk [vmem:[%s223 + $0xf4] sm:$0xf] %vm1377, %v1310
      %1440 = vst.msk [vmem:[%s223 + $0xf8] sm:$0xf] %vm1377, %v1311
      %1441 = vst.msk [vmem:[%s223 + $0xfc] sm:$0xf] %vm1377, %v1312
      %s1442 = smul.u32 64, %s18
      %p1443 = scmp.lt.s32.totalorder %s1442, 511
      %s1444 = scalar_select %p1443, %s1442, 511
      %p1445 = scmp.lt.s32.totalorder %s19, 0
      %s1446 = scalar_select %p1445, %s19, 0
      %s1447 = sadd.s32 %s1446, %s1444
      %s1448 = smul.addr %s1447, 4
      %s1449 = scalar_lea.vmem %s3, %s1448
      // Predicated region
      $region33: #{tpu_custom_call.1} parent=31 // pred_check
        %p1450 = pneg %p124
      $region34: #{tpu_custom_call.1} parent=31 // pred_check_branch
        %1452 = sbr.rel (%p1450) target = $region36
      $region35: #{tpu_custom_call.1} parent=31 // pred_region
        %s1453 = smul.u32 64, %s18
      $region36: #{tpu_custom_call.1} parent=31 // pred_fallthru
        _
    $region32: #{tpu_custom_call.1} parent=5 // pred_fallthru
      _
    %p1454 = scmp.le.s32.totalorder 2, %s9
    // Predicated region
    $region37: #{tpu_custom_call.1} parent=5 // pred_check
      %p1455 = pneg %p1454
    $region38: #{tpu_custom_call.1} parent=5 // pred_check_branch
      %1457 = sbr.rel (%p1455) target = $region40
    $region39: #{tpu_custom_call.1} parent=5 // pred_region
      %s1458 = ssub.s32 %s9, 2
      // Predicated region
      $region41: #{tpu_custom_call.1} parent=39 // pred_check
        %p1459 = pneg %p130
      $region42: #{tpu_custom_call.1} parent=39 // pred_check_branch
        %1461 = sbr.rel (%p1459) target = $region44
      $region43: #{tpu_custom_call.1} parent=39 // pred_region
        %s1462 = smul.u32 64, %s20
        %p1463 = scmp.lt.s32.totalorder %s1462, 511
        %s1464 = scalar_select %p1463, %s1462, 511
        %p1465 = scmp.lt.s32.totalorder %s21, 0
        %s1466 = scalar_select %p1465, %s21, 0
        %s1467 = sadd.s32 %s1466, %s1464
        %s1468 = smul.addr %s1467, 4
        %s1469 = scalar_lea.vmem %s3, %s1468
      $region44: #{tpu_custom_call.1} parent=39 // pred_fallthru
        _
    $region40: #{tpu_custom_call.1} parent=5 // pred_fallthru
      _
  $region6: #{tpu_custom_call.1} parent=0 // loop_footer
    %s13 = sadd.s32 1, %s9
  $region7: #{tpu_custom_call.1} parent=0 // loop_footer_branch
    %8 = sbr.rel target = $region3
  $region8: #{tpu_custom_call.1} parent=0 // loop_exit
    _

</llo_original>
